<compile_context>
chip_gen: v6e
topology: v6e:2x2x1
jax: 0.10.0
libtpu: 0.0.40
codegen_flags: <defaults>
</compile_context>

<pallas_src>
import functools

import jax
import jax.numpy as jnp
from jax.experimental import pallas as pl
from jax.experimental.pallas import tpu as pltpu


def _round_up(n: int, m: int) -> int:
    return (n + m - 1) // m * m


def _fused_mlp_kernel(*refs, num_layers: int, compute_dtype):
    # refs = x_ref, w1, b1, w2, b2, ..., wL, bL, o_ref
    x_ref = refs[0]
    o_ref = refs[-1]
    h = x_ref[...]
    if compute_dtype is None:
        h = h.astype(jnp.float32)
    # else: x was cast to compute_dtype once in the wrapper — feed it straight
    # to the MXU, no redundant f32 round-trip of the activation tile.
    for i in range(num_layers):
        w = refs[1 + 2 * i][...]
        b = refs[2 + 2 * i][...]
        # MXU matmul, f32 accumulation.
        y = jnp.dot(h, w, preferred_element_type=jnp.float32)
        # Bias add (+ ReLU) in f32 on the VPU (v5e has no bf16 VPU).
        y = y + b.astype(jnp.float32)
        if i < num_layers - 1:
            y = jnp.maximum(y, 0.0)
            h = y if compute_dtype is None else y.astype(compute_dtype)
        else:
            h = y  # keep full f32 for the final store
    o_ref[...] = h.astype(o_ref.dtype)


def mlp_forward_pallas(x, params, *, tile_m=512, compute_dtype=None,
                       lane_multiple=128, single_buffer_weights=True):
    """x: [..., input_dim] -> [..., output_dim]; matches MLP.forward semantics.

    Single fused pallas_call over all layers; grid only over the row dim.
    `params` is a list of (W[in,out], b[out]) — i.e. torch weights transposed.
    """
    lead_shape = x.shape[:-1]
    in_dim = x.shape[-1]
    x2d = x.reshape(-1, in_dim)
    M = x2d.shape[0]
    num_layers = len(params)
    out_dim = params[-1][0].shape[1]
    out_dtype = x.dtype

    # ---- Pad EVERY layer boundary to a lane multiple (lane-dense MXU tiles
    # and an unmasked final vst).  Zero padding is exact (see header comment).
    dims = [in_dim] + [w.shape[1] for (w, _) in params]
    dims_p = [_round_up(d, lane_multiple) for d in dims]
    in_dim_p, out_dim_p = dims_p[0], dims_p[-1]

    padded_params = []
    for li, (w, b) in enumerate(params):
        k, n = w.shape
        kp, np_ = dims_p[li], dims_p[li + 1]
        if (k, n) != (kp, np_):
            w = jnp.pad(w, ((0, kp - k), (0, np_ - n)))
        if n != np_:
            b = jnp.pad(b, (0, np_ - n))
        padded_params.append((w, b.reshape(1, np_)))  # bias reshape hoisted

    if in_dim_p != in_dim:
        x2d = jnp.pad(x2d, ((0, 0), (0, in_dim_p - in_dim)))

    # ---- Operand dtypes: with compute_dtype (e.g. bf16) cast x and weights
    # ONCE here; biases stay f32 for the VPU bias-add.
    if compute_dtype is not None:
        x2d = x2d.astype(compute_dtype)
        padded_params = [(w.astype(compute_dtype), b) for (w, b) in padded_params]

    # ---- Row tiling: multiple of 8 sublanes; ensure >= 2 grid steps when M
    # allows so "parallel" shards across both TensorCores on v7x.
    tile = min(tile_m, _round_up(M, 8))
    if _round_up(M, tile) // tile < 2 and M > 8:
        tile = max(8, _round_up((M + 1) // 2, 8))
    m_padded = _round_up(M, tile)
    if m_padded != M:
        x2d = jnp.pad(x2d, ((0, m_padded - M), (0, 0)))
    grid = (m_padded // tile,)

    # ---- Operands / specs.  Weights & biases: constant index_map, DMA'd once;
    # single-buffered (Buffered(1)) since they never change across the M grid.
    wb_kwargs = (
        dict(pipeline_mode=pl.Buffered(1)) if single_buffer_weights else {})
    operands = [x2d]
    in_specs = [pl.BlockSpec((tile, in_dim_p), lambda i: (i, 0))]
    for (w, b) in padded_params:
        k, n = w.shape
        operands.append(w)
        in_specs.append(pl.BlockSpec((k, n), lambda i: (0, 0), **wb_kwargs))
        operands.append(b)
        in_specs.append(pl.BlockSpec((1, n), lambda i: (0, 0), **wb_kwargs))

    # ---- VMEM budget: 2x x-tile + resident weights/biases + 2x out-tile +
    # f32 intermediates, with 2x slack; never below 16 MiB, capped at 64 MiB.
    act_itemsize = x2d.dtype.itemsize
    weight_bytes = sum(w.size * w.dtype.itemsize + b.size * b.dtype.itemsize
                       for (w, b) in padded_params)
    max_dim = max(dims_p)
    bytes_needed = (2 * tile * in_dim_p * act_itemsize
                    + weight_bytes
                    + 2 * tile * out_dim_p * jnp.dtype(out_dtype).itemsize
                    + 2 * tile * max_dim * 4)
    vmem_limit = int(min(max(2 * bytes_needed, 16 << 20), 64 << 20))

    flops = 2 * m_padded * sum(dims_p[i] * dims_p[i + 1]
                               for i in range(num_layers))
    bytes_accessed = int(m_padded * in_dim_p * act_itemsize
                         + weight_bytes
                         + m_padded * out_dim_p * jnp.dtype(out_dtype).itemsize)
    cost = pl.CostEstimate(flops=int(flops), transcendentals=0,
                           bytes_accessed=bytes_accessed)

    kernel = functools.partial(_fused_mlp_kernel,
                               num_layers=num_layers,
                               compute_dtype=compute_dtype)
    out = pl.pallas_call(
        kernel,
        out_shape=jax.ShapeDtypeStruct((m_padded, out_dim_p), out_dtype),
        grid=grid,
        in_specs=in_specs,
        out_specs=pl.BlockSpec((tile, out_dim_p), lambda i: (i, 0)),
        compiler_params=pltpu.CompilerParams(
            dimension_semantics=("parallel",),
            vmem_limit_bytes=vmem_limit),
        cost_estimate=cost,
    )(*operands)

    out = out[:M, :out_dim]
    return out.reshape(*lead_shape, out_dim)


def init_mlp_params(key, input_dim, hidden_dim, output_dim, num_layers,
                    dtype=jnp.float32):
    """Deterministic init mirroring nn.Linear default (uniform +-1/sqrt(fan_in))."""
    h = [hidden_dim] * (num_layers - 1)
    in_dims = [input_dim] + h
    out_dims = h + [output_dim]
    params = []
    for n_in, n_out in zip(in_dims, out_dims):
        key, kw, kb = jax.random.split(key, 3)
        bound = 1.0 / (n_in ** 0.5)
        # stored as [in, out] == torch weight transposed
        w = jax.random.uniform(kw, (n_in, n_out), dtype, -bound, bound)
        b = jax.random.uniform(kb, (n_out,), dtype, -bound, bound)
        params.append((w, b))
    return params


def mlp_reference(x, params):
    """Pure-JAX reference for verification."""
    num_layers = len(params)
    y = x
    for i, (w, b) in enumerate(params):
        y = jnp.dot(y, w) + b
        if i < num_layers - 1:
            y = jnp.maximum(y, 0.0)
    return y


if __name__ == "__main__":
    # Small shapes: batch=2, seq=8, input_dim=32, hidden_dim=32, output_dim=16,
    # num_layers=3 (same structure as the DETR-style MLP head).
    batch, seq = 2, 8
    input_dim, hidden_dim, output_dim, num_layers = 32, 32, 16, 3

    key = jax.random.PRNGKey(0)
    key, kx = jax.random.split(key)
    x = jax.random.normal(kx, (batch, seq, input_dim), dtype=jnp.float32)
    params = init_mlp_params(key, input_dim, hidden_dim, output_dim, num_layers)

    def run(compute_dtype, sbw):
        f = jax.jit(functools.partial(mlp_forward_pallas,
                                      compute_dtype=compute_dtype,
                                      single_buffer_weights=sbw))
        return jax.block_until_ready(f(x, params))

    # f32-operand path (matches the pure-JAX reference).  Prefer the
    # single-buffered-weight config; fall back to default buffering if this
    # JAX build does not accept pipeline_mode on top-level BlockSpecs.
    sbw = True
    try:
        out = run(None, sbw)
    except Exception:
        sbw = False
        out = run(None, sbw)

    ref = mlp_reference(x, params)
    assert out.shape == (batch, seq, output_dim), out.shape
    assert jnp.allclose(out, ref, atol=1e-5, rtol=1e-5), \
        float(jnp.max(jnp.abs(out - ref)))

    # bf16-operand / f32-accumulate production path (MXU-native on v5e/v6e/v7x).
    out_bf16 = run(jnp.bfloat16, sbw)
    assert out_bf16.shape == (batch, seq, output_dim), out_bf16.shape
    assert float(jnp.max(jnp.abs(out_bf16 - ref))) < 0.25, \
        float(jnp.max(jnp.abs(out_bf16 - ref)))

    print("KERNEL_OK")
</pallas_src>

<mosaic_0001>
module attributes {stable_mosaic.version = 11 : i64} {
  func.func @_fused_mlp_kernel(%arg0: i32, %arg1: memref<8x128xf32, #tpu.memory_space<vmem>>, %arg2: memref<128x128xf32, #tpu.memory_space<vmem>>, %arg3: memref<1x128xf32, #tpu.memory_space<vmem>>, %arg4: memref<128x128xf32, #tpu.memory_space<vmem>>, %arg5: memref<1x128xf32, #tpu.memory_space<vmem>>, %arg6: memref<128x128xf32, #tpu.memory_space<vmem>>, %arg7: memref<1x128xf32, #tpu.memory_space<vmem>>, %arg8: memref<8x128xf32, #tpu.memory_space<vmem>>) attributes {dimension_semantics = [#tpu.dimension_semantics<parallel>], iteration_bounds = array<i64: 2>, scalar_prefetch = 0 : i64, scratch_operands = 0 : i64, tpu.core_type = #tpu.core_type<tc>, window_params = [{transform_indices = @transform_0, window_bounds = array<i64: 8, 128>}, {pipeline_mode = #tpu.pipeline_mode<synchronous>, transform_indices = @transform_1, window_bounds = array<i64: 128, 128>}, {pipeline_mode = #tpu.pipeline_mode<synchronous>, transform_indices = @transform_2, window_bounds = array<i64: 1, 128>}, {pipeline_mode = #tpu.pipeline_mode<synchronous>, transform_indices = @transform_3, window_bounds = array<i64: 128, 128>}, {pipeline_mode = #tpu.pipeline_mode<synchronous>, transform_indices = @transform_4, window_bounds = array<i64: 1, 128>}, {pipeline_mode = #tpu.pipeline_mode<synchronous>, transform_indices = @transform_5, window_bounds = array<i64: 128, 128>}, {pipeline_mode = #tpu.pipeline_mode<synchronous>, transform_indices = @transform_6, window_bounds = array<i64: 1, 128>}, {transform_indices = @transform_7, window_bounds = array<i64: 8, 128>}]} {
    %c0 = arith.constant 0 : index
    %c0_0 = arith.constant 0 : index
    %0 = vector.load %arg1[%c0, %c0_0] : memref<8x128xf32, #tpu.memory_space<vmem>>, vector<8x128xf32>
    %c0_1 = arith.constant 0 : index
    %c0_2 = arith.constant 0 : index
    %1 = vector.load %arg2[%c0_1, %c0_2] : memref<128x128xf32, #tpu.memory_space<vmem>>, vector<128x128xf32>
    %c0_3 = arith.constant 0 : index
    %c0_4 = arith.constant 0 : index
    %2 = vector.load %arg3[%c0_3, %c0_4] : memref<1x128xf32, #tpu.memory_space<vmem>>, vector<1x128xf32>
    %cst = arith.constant dense<0.000000e+00> : vector<8x128xf32>
    %3 = tpu.matmul %0, %1, %cst {dimension_numbers = #tpu.dot_dimension_numbers<[1], [0], [0], [1], [0, 0, 1, 1], [], []>} : vector<8x128xf32>, vector<128x128xf32>, vector<8x128xf32> -> vector<8x128xf32>
    %4 = vector.broadcast %2 : vector<1x128xf32> to vector<8x128xf32>
    %5 = arith.addf %3, %4 : vector<8x128xf32>
    %cst_5 = arith.constant 0.000000e+00 : f32
    %6 = vector.broadcast %cst_5 : f32 to vector<8x128xf32>
    %7 = arith.maximumf %5, %6 : vector<8x128xf32>
    %c0_6 = arith.constant 0 : index
    %c0_7 = arith.constant 0 : index
    %8 = vector.load %arg4[%c0_6, %c0_7] : memref<128x128xf32, #tpu.memory_space<vmem>>, vector<128x128xf32>
    %c0_8 = arith.constant 0 : index
    %c0_9 = arith.constant 0 : index
    %9 = vector.load %arg5[%c0_8, %c0_9] : memref<1x128xf32, #tpu.memory_space<vmem>>, vector<1x128xf32>
    %cst_10 = arith.constant dense<0.000000e+00> : vector<8x128xf32>
    %10 = tpu.matmul %7, %8, %cst_10 {dimension_numbers = #tpu.dot_dimension_numbers<[1], [0], [0], [1], [0, 0, 1, 1], [], []>} : vector<8x128xf32>, vector<128x128xf32>, vector<8x128xf32> -> vector<8x128xf32>
    %11 = vector.broadcast %9 : vector<1x128xf32> to vector<8x128xf32>
    %12 = arith.addf %10, %11 : vector<8x128xf32>
    %cst_11 = arith.constant 0.000000e+00 : f32
    %13 = vector.broadcast %cst_11 : f32 to vector<8x128xf32>
    %14 = arith.maximumf %12, %13 : vector<8x128xf32>
    %c0_12 = arith.constant 0 : index
    %c0_13 = arith.constant 0 : index
    %15 = vector.load %arg6[%c0_12, %c0_13] : memref<128x128xf32, #tpu.memory_space<vmem>>, vector<128x128xf32>
    %c0_14 = arith.constant 0 : index
    %c0_15 = arith.constant 0 : index
    %16 = vector.load %arg7[%c0_14, %c0_15] : memref<1x128xf32, #tpu.memory_space<vmem>>, vector<1x128xf32>
    %cst_16 = arith.constant dense<0.000000e+00> : vector<8x128xf32>
    %17 = tpu.matmul %14, %15, %cst_16 {dimension_numbers = #tpu.dot_dimension_numbers<[1], [0], [0], [1], [0, 0, 1, 1], [], []>} : vector<8x128xf32>, vector<128x128xf32>, vector<8x128xf32> -> vector<8x128xf32>
    %18 = vector.broadcast %16 : vector<1x128xf32> to vector<8x128xf32>
    %19 = arith.addf %17, %18 : vector<8x128xf32>
    %c0_17 = arith.constant 0 : index
    %c0_18 = arith.constant 0 : index
    %20 = vector.load %arg8[%c0_17, %c0_18] : memref<8x128xf32, #tpu.memory_space<vmem>>, vector<8x128xf32>
    tpu.vector_store %arg8[%c0_17, %c0_18], %19 {strides = array<i32>} : memref<8x128xf32, #tpu.memory_space<vmem>>, vector<8x128xf32>,
    return
  }
  func.func @transform_0(%arg0: i32) -> (i32, i32) {
    %c0_i32 = arith.constant 0 : i32
    %c0_i32_0 = arith.constant 0 : i32
    return %arg0, %c0_i32 : i32, i32
  }
  func.func @transform_1(%arg0: i32) -> (i32, i32) {
    %c0_i32 = arith.constant 0 : i32
    %c0_i32_0 = arith.constant 0 : i32
    %c0_i32_1 = arith.constant 0 : i32
    return %c0_i32, %c0_i32_0 : i32, i32
  }
  func.func @transform_2(%arg0: i32) -> (i32, i32) {
    %c0_i32 = arith.constant 0 : i32
    %c0_i32_0 = arith.constant 0 : i32
    %c0_i32_1 = arith.constant 0 : i32
    return %c0_i32, %c0_i32_0 : i32, i32
  }
  func.func @transform_3(%arg0: i32) -> (i32, i32) {
    %c0_i32 = arith.constant 0 : i32
    %c0_i32_0 = arith.constant 0 : i32
    %c0_i32_1 = arith.constant 0 : i32
    return %c0_i32, %c0_i32_0 : i32, i32
  }
  func.func @transform_4(%arg0: i32) -> (i32, i32) {
    %c0_i32 = arith.constant 0 : i32
    %c0_i32_0 = arith.constant 0 : i32
    %c0_i32_1 = arith.constant 0 : i32
    return %c0_i32, %c0_i32_0 : i32, i32
  }
  func.func @transform_5(%arg0: i32) -> (i32, i32) {
    %c0_i32 = arith.constant 0 : i32
    %c0_i32_0 = arith.constant 0 : i32
    %c0_i32_1 = arith.constant 0 : i32
    return %c0_i32, %c0_i32_0 : i32, i32
  }
  func.func @transform_6(%arg0: i32) -> (i32, i32) {
    %c0_i32 = arith.constant 0 : i32
    %c0_i32_0 = arith.constant 0 : i32
    %c0_i32_1 = arith.constant 0 : i32
    return %c0_i32, %c0_i32_0 : i32, i32
  }
  func.func @transform_7(%arg0: i32) -> (i32, i32) {
    %c0_i32 = arith.constant 0 : i32
    %c0_i32_0 = arith.constant 0 : i32
    return %arg0, %c0_i32 : i32, i32
  }
}

module attributes {stable_mosaic.version = 11 : i64} {
  func.func @_fused_mlp_kernel(%arg0: i32, %arg1: memref<8x128xf32, #tpu.memory_space<vmem>>, %arg2: memref<128x128xf32, #tpu.memory_space<vmem>>, %arg3: memref<1x128xf32, #tpu.memory_space<vmem>>, %arg4: memref<128x128xf32, #tpu.memory_space<vmem>>, %arg5: memref<1x128xf32, #tpu.memory_space<vmem>>, %arg6: memref<128x128xf32, #tpu.memory_space<vmem>>, %arg7: memref<1x128xf32, #tpu.memory_space<vmem>>, %arg8: memref<8x128xf32, #tpu.memory_space<vmem>>) attributes {dimension_semantics = [#tpu.dimension_semantics<parallel>], iteration_bounds = array<i64: 2>, scalar_prefetch = 0 : i64, scratch_operands = 0 : i64, tpu.core_type = #tpu.core_type<tc>, window_params = [{transform_indices = @transform_0, window_bounds = array<i64: 8, 128>}, {pipeline_mode = #tpu.pipeline_mode<synchronous>, transform_indices = @transform_1, window_bounds = array<i64: 128, 128>}, {pipeline_mode = #tpu.pipeline_mode<synchronous>, transform_indices = @transform_2, window_bounds = array<i64: 1, 128>}, {pipeline_mode = #tpu.pipeline_mode<synchronous>, transform_indices = @transform_3, window_bounds = array<i64: 128, 128>}, {pipeline_mode = #tpu.pipeline_mode<synchronous>, transform_indices = @transform_4, window_bounds = array<i64: 1, 128>}, {pipeline_mode = #tpu.pipeline_mode<synchronous>, transform_indices = @transform_5, window_bounds = array<i64: 128, 128>}, {pipeline_mode = #tpu.pipeline_mode<synchronous>, transform_indices = @transform_6, window_bounds = array<i64: 1, 128>}, {transform_indices = @transform_7, window_bounds = array<i64: 8, 128>}]} {
    %c0 = arith.constant 0 : index
    %c0_0 = arith.constant 0 : index
    %0 = vector.load %arg1[%c0, %c0_0] : memref<8x128xf32, #tpu.memory_space<vmem>>, vector<8x128xf32>
    %c0_1 = arith.constant 0 : index
    %c0_2 = arith.constant 0 : index
    %1 = vector.load %arg2[%c0_1, %c0_2] : memref<128x128xf32, #tpu.memory_space<vmem>>, vector<128x128xf32>
    %c0_3 = arith.constant 0 : index
    %c0_4 = arith.constant 0 : index
    %2 = vector.load %arg3[%c0_3, %c0_4] : memref<1x128xf32, #tpu.memory_space<vmem>>, vector<1x128xf32>
    %cst = arith.constant dense<0.000000e+00> : vector<8x128xf32>
    %3 = tpu.matmul %0, %1, %cst {dimension_numbers = #tpu.dot_dimension_numbers<[1], [0], [0], [1], [0, 0, 1, 1], [], []>} : vector<8x128xf32>, vector<128x128xf32>, vector<8x128xf32> -> vector<8x128xf32>
    %4 = vector.broadcast %2 : vector<1x128xf32> to vector<8x128xf32>
    %5 = arith.addf %3, %4 : vector<8x128xf32>
    %cst_5 = arith.constant 0.000000e+00 : f32
    %6 = vector.broadcast %cst_5 : f32 to vector<8x128xf32>
    %7 = arith.maximumf %5, %6 : vector<8x128xf32>
    %c0_6 = arith.constant 0 : index
    %c0_7 = arith.constant 0 : index
    %8 = vector.load %arg4[%c0_6, %c0_7] : memref<128x128xf32, #tpu.memory_space<vmem>>, vector<128x128xf32>
    %c0_8 = arith.constant 0 : index
    %c0_9 = arith.constant 0 : index
    %9 = vector.load %arg5[%c0_8, %c0_9] : memref<1x128xf32, #tpu.memory_space<vmem>>, vector<1x128xf32>
    %cst_10 = arith.constant dense<0.000000e+00> : vector<8x128xf32>
    %10 = tpu.matmul %7, %8, %cst_10 {dimension_numbers = #tpu.dot_dimension_numbers<[1], [0], [0], [1], [0, 0, 1, 1], [], []>} : vector<8x128xf32>, vector<128x128xf32>, vector<8x128xf32> -> vector<8x128xf32>
    %11 = vector.broadcast %9 : vector<1x128xf32> to vector<8x128xf32>
    %12 = arith.addf %10, %11 : vector<8x128xf32>
    %cst_11 = arith.constant 0.000000e+00 : f32
    %13 = vector.broadcast %cst_11 : f32 to vector<8x128xf32>
    %14 = arith.maximumf %12, %13 : vector<8x128xf32>
    %c0_12 = arith.constant 0 : index
    %c0_13 = arith.constant 0 : index
    %15 = vector.load %arg6[%c0_12, %c0_13] : memref<128x128xf32, #tpu.memory_space<vmem>>, vector<128x128xf32>
    %c0_14 = arith.constant 0 : index
    %c0_15 = arith.constant 0 : index
    %16 = vector.load %arg7[%c0_14, %c0_15] : memref<1x128xf32, #tpu.memory_space<vmem>>, vector<1x128xf32>
    %cst_16 = arith.constant dense<0.000000e+00> : vector<8x128xf32>
    %17 = tpu.matmul %14, %15, %cst_16 {dimension_numbers = #tpu.dot_dimension_numbers<[1], [0], [0], [1], [0, 0, 1, 1], [], []>} : vector<8x128xf32>, vector<128x128xf32>, vector<8x128xf32> -> vector<8x128xf32>
    %18 = vector.broadcast %16 : vector<1x128xf32> to vector<8x128xf32>
    %19 = arith.addf %17, %18 : vector<8x128xf32>
    %c0_17 = arith.constant 0 : index
    %c0_18 = arith.constant 0 : index
    %20 = vector.load %arg8[%c0_17, %c0_18] : memref<8x128xf32, #tpu.memory_space<vmem>>, vector<8x128xf32>
    tpu.vector_store %arg8[%c0_17, %c0_18], %19 {strides = array<i32>} : memref<8x128xf32, #tpu.memory_space<vmem>>, vector<8x128xf32>,
    return
  }
  func.func @transform_0(%arg0: i32) -> (i32, i32) {
    %c0_i32 = arith.constant 0 : i32
    %c0_i32_0 = arith.constant 0 : i32
    return %arg0, %c0_i32 : i32, i32
  }
  func.func @transform_1(%arg0: i32) -> (i32, i32) {
    %c0_i32 = arith.constant 0 : i32
    %c0_i32_0 = arith.constant 0 : i32
    %c0_i32_1 = arith.constant 0 : i32
    return %c0_i32, %c0_i32_0 : i32, i32
  }
  func.func @transform_2(%arg0: i32) -> (i32, i32) {
    %c0_i32 = arith.constant 0 : i32
    %c0_i32_0 = arith.constant 0 : i32
    %c0_i32_1 = arith.constant 0 : i32
    return %c0_i32, %c0_i32_0 : i32, i32
  }
  func.func @transform_3(%arg0: i32) -> (i32, i32) {
    %c0_i32 = arith.constant 0 : i32
    %c0_i32_0 = arith.constant 0 : i32
    %c0_i32_1 = arith.constant 0 : i32
    return %c0_i32, %c0_i32_0 : i32, i32
  }
  func.func @transform_4(%arg0: i32) -> (i32, i32) {
    %c0_i32 = arith.constant 0 : i32
    %c0_i32_0 = arith.constant 0 : i32
    %c0_i32_1 = arith.constant 0 : i32
    return %c0_i32, %c0_i32_0 : i32, i32
  }
  func.func @transform_5(%arg0: i32) -> (i32, i32) {
    %c0_i32 = arith.constant 0 : i32
    %c0_i32_0 = arith.constant 0 : i32
    %c0_i32_1 = arith.constant 0 : i32
    return %c0_i32, %c0_i32_0 : i32, i32
  }
  func.func @transform_6(%arg0: i32) -> (i32, i32) {
    %c0_i32 = arith.constant 0 : i32
    %c0_i32_0 = arith.constant 0 : i32
    %c0_i32_1 = arith.constant 0 : i32
    return %c0_i32, %c0_i32_0 : i32, i32
  }
  func.func @transform_7(%arg0: i32) -> (i32, i32) {
    %c0_i32 = arith.constant 0 : i32
    %c0_i32_0 = arith.constant 0 : i32
    return %arg0, %c0_i32 : i32, i32
  }
}

</mosaic_0001>

<llo_original>
// kernel: mlp_forward_pallas.1
$region0: #{mlp_forward_pallas.1}
  #allocation0 [shape = 'u32[]', space=smem, size = 0x4, offset = 0x4, fixed_abs, tag = 'smem constant byte address 0x4 - core index']
  #allocation1 [shape = 'u32[144,128]{1,0:T(1,128)}', space=vmem, size = 0x12000, scoped, tag = 'internal scratch']
  %s0 = inlined_call_operand.vmem [shape: f32[16,128], index: 0, kind: input, shape index: {}]
  %s1 = inlined_call_operand.vmem [shape: f32[128,128], index: 1, kind: input, shape index: {}]
  %s2 = inlined_call_operand.vmem [shape: f32[1,128], index: 2, kind: input, shape index: {}]
  %s3 = inlined_call_operand.vmem [shape: f32[128,128], index: 3, kind: input, shape index: {}]
  %s4 = inlined_call_operand.vmem [shape: f32[1,128], index: 4, kind: input, shape index: {}]
  %s5 = inlined_call_operand.vmem [shape: f32[128,128], index: 5, kind: input, shape index: {}]
  %s6 = inlined_call_operand.vmem [shape: f32[1,128], index: 6, kind: input, shape index: {}]
  %s7 = inlined_call_operand.vmem [shape: f32[16,128], index: 7, kind: output, shape index: {}]
  %s8 = sld [smem:[#allocation0]]
  $region61: #{mlp_forward_pallas.1} parent=0
    _
  %s10 = ssub.s32 1, %s8
  %s11 = scalar_select 0, %s10, %s8
  loop: start=0, step=1, limit=4
  $region2: #{mlp_forward_pallas.1} parent=0 // loop_pre_header
    _
  $region3: #{mlp_forward_pallas.1} parent=0 // loop_header
    %s13 = sphi 0, %s17
    %p14 = scmp.ge.s32.totalorder %s13, 4
    %s23 = sphi 0, %s25
    %s26 = sphi 0, %s23
    %s27 = sphi 0, %s26
    %s43 = sphi 0, %s27
    %s47 = sphi 0, %s47
    %s49 = sphi 0, %s47
    %s50 = sphi 0, %s49
    %s64 = sphi 0, %s50
    %s68 = sphi 0, %s68
    %s70 = sphi 0, %s68
    %s71 = sphi 0, %s70
    %s85 = sphi 0, %s71
    %s89 = sphi 0, %s89
    %s91 = sphi 0, %s89
    %s92 = sphi 0, %s91
    %s106 = sphi 0, %s92
    %s110 = sphi 0, %s110
    %s112 = sphi 0, %s110
    %s113 = sphi 0, %s112
    %s127 = sphi 0, %s113
    %s131 = sphi 0, %s131
    %s133 = sphi 0, %s131
    %s134 = sphi 0, %s133
    %s148 = sphi 0, %s134
    %s152 = sphi 0, %s152
    %s154 = sphi 0, %s152
    %s155 = sphi 0, %s154
    %s169 = sphi 0, %s155
    %s175 = sphi 0, %s177
    %s178 = sphi 0, %s175
    %s179 = sphi 0, %s178
    %s195 = sphi 0, %s179
  $region4: #{mlp_forward_pallas.1} parent=0 // loop_header_branch
    %16 = sbr.rel (%p14) target = $region8
  $region5: #{mlp_forward_pallas.1} parent=0 // loop_body
    %s18 = ssub.s32 %s13, 1
    %s19 = ssub.s32 %s13, 2
    %s20 = sadd.s32 %s13, 1
    %s21 = ssub.s32 %s13, %s20
    %p22 = scmp.eq.s32.totalorder %s21, 0
    %s24 = sadd.s32 %s23, 1
    %s25 = scalar_select %p22, %s23, %s24
    %p28 = pneg %p22
    %p29 = scmp.eq.s32.totalorder %s13, 1
    %p30 = por %p28, %p29
    %p31 = scmp.ne.s32.totalorder %s23, %s26
    %p32 = scmp.eq.s32.totalorder %s13, 0
    %p33 = por %p31, %p32
    %p34 = scmp.ne.s32.totalorder %s23, %s26
    %p35 = scmp.eq.s32.totalorder %s18, 1
    %p36 = por %p34, %p35
    %p37 = scmp.ne.s32.totalorder %s26, %s27
    %p38 = scmp.eq.s32.totalorder %s18, 0
    %p39 = por %p37, %p38
    %p40 = scmp.ne.s32.totalorder %s26, %s27
    %p41 = scmp.eq.s32.totalorder %s19, 1
    %p42 = por %p40, %p41
    %p44 = scmp.ne.s32.totalorder %s27, %s43
    %p45 = scmp.eq.s32.totalorder %s19, 0
    %p46 = por %p44, %p45
    %s48 = sadd.s32 %s47, 1
    %p51 = scmp.eq.s32.totalorder %s13, 1
    %p52 = scmp.ne.s32.totalorder %s47, %s49
    %p53 = scmp.eq.s32.totalorder %s13, 0
    %p54 = por %p52, %p53
    %p55 = scmp.ne.s32.totalorder %s47, %s49
    %p56 = scmp.eq.s32.totalorder %s18, 1
    %p57 = por %p55, %p56
    %p58 = scmp.ne.s32.totalorder %s49, %s50
    %p59 = scmp.eq.s32.totalorder %s18, 0
    %p60 = por %p58, %p59
    %p61 = scmp.ne.s32.totalorder %s49, %s50
    %p62 = scmp.eq.s32.totalorder %s19, 1
    %p63 = por %p61, %p62
    %p65 = scmp.ne.s32.totalorder %s50, %s64
    %p66 = scmp.eq.s32.totalorder %s19, 0
    %p67 = por %p65, %p66
    %s69 = sadd.s32 %s68, 1
    %p72 = scmp.eq.s32.totalorder %s13, 1
    %p73 = scmp.ne.s32.totalorder %s68, %s70
    %p74 = scmp.eq.s32.totalorder %s13, 0
    %p75 = por %p73, %p74
    %p76 = scmp.ne.s32.totalorder %s68, %s70
    %p77 = scmp.eq.s32.totalorder %s18, 1
    %p78 = por %p76, %p77
    %p79 = scmp.ne.s32.totalorder %s70, %s71
    %p80 = scmp.eq.s32.totalorder %s18, 0
    %p81 = por %p79, %p80
    %p82 = scmp.ne.s32.totalorder %s70, %s71
    %p83 = scmp.eq.s32.totalorder %s19, 1
    %p84 = por %p82, %p83
    %p86 = scmp.ne.s32.totalorder %s71, %s85
    %p87 = scmp.eq.s32.totalorder %s19, 0
    %p88 = por %p86, %p87
    %s90 = sadd.s32 %s89, 1
    %p93 = scmp.eq.s32.totalorder %s13, 1
    %p94 = scmp.ne.s32.totalorder %s89, %s91
    %p95 = scmp.eq.s32.totalorder %s13, 0
    %p96 = por %p94, %p95
    %p97 = scmp.ne.s32.totalorder %s89, %s91
    %p98 = scmp.eq.s32.totalorder %s18, 1
    %p99 = por %p97, %p98
    %p100 = scmp.ne.s32.totalorder %s91, %s92
    %p101 = scmp.eq.s32.totalorder %s18, 0
    %p102 = por %p100, %p101
    %p103 = scmp.ne.s32.totalorder %s91, %s92
    %p104 = scmp.eq.s32.totalorder %s19, 1
    %p105 = por %p103, %p104
    %p107 = scmp.ne.s32.totalorder %s92, %s106
    %p108 = scmp.eq.s32.totalorder %s19, 0
    %p109 = por %p107, %p108
    %s111 = sadd.s32 %s110, 1
    %p114 = scmp.eq.s32.totalorder %s13, 1
    %p115 = scmp.ne.s32.totalorder %s110, %s112
    %p116 = scmp.eq.s32.totalorder %s13, 0
    %p117 = por %p115, %p116
    %p118 = scmp.ne.s32.totalorder %s110, %s112
    %p119 = scmp.eq.s32.totalorder %s18, 1
    %p120 = por %p118, %p119
    %p121 = scmp.ne.s32.totalorder %s112, %s113
    %p122 = scmp.eq.s32.totalorder %s18, 0
    %p123 = por %p121, %p122
    %p124 = scmp.ne.s32.totalorder %s112, %s113
    %p125 = scmp.eq.s32.totalorder %s19, 1
    %p126 = por %p124, %p125
    %p128 = scmp.ne.s32.totalorder %s113, %s127
    %p129 = scmp.eq.s32.totalorder %s19, 0
    %p130 = por %p128, %p129
    %s132 = sadd.s32 %s131, 1
    %p135 = scmp.eq.s32.totalorder %s13, 1
    %p136 = scmp.ne.s32.totalorder %s131, %s133
    %p137 = scmp.eq.s32.totalorder %s13, 0
    %p138 = por %p136, %p137
    %p139 = scmp.ne.s32.totalorder %s131, %s133
    %p140 = scmp.eq.s32.totalorder %s18, 1
    %p141 = por %p139, %p140
    %p142 = scmp.ne.s32.totalorder %s133, %s134
    %p143 = scmp.eq.s32.totalorder %s18, 0
    %p144 = por %p142, %p143
    %p145 = scmp.ne.s32.totalorder %s133, %s134
    %p146 = scmp.eq.s32.totalorder %s19, 1
    %p147 = por %p145, %p146
    %p149 = scmp.ne.s32.totalorder %s134, %s148
    %p150 = scmp.eq.s32.totalorder %s19, 0
    %p151 = por %p149, %p150
    %s153 = sadd.s32 %s152, 1
    %p156 = scmp.eq.s32.totalorder %s13, 1
    %p157 = scmp.ne.s32.totalorder %s152, %s154
    %p158 = scmp.eq.s32.totalorder %s13, 0
    %p159 = por %p157, %p158
    %p160 = scmp.ne.s32.totalorder %s152, %s154
    %p161 = scmp.eq.s32.totalorder %s18, 1
    %p162 = por %p160, %p161
    %p163 = scmp.ne.s32.totalorder %s154, %s155
    %p164 = scmp.eq.s32.totalorder %s18, 0
    %p165 = por %p163, %p164
    %p166 = scmp.ne.s32.totalorder %s154, %s155
    %p167 = scmp.eq.s32.totalorder %s19, 1
    %p168 = por %p166, %p167
    %p170 = scmp.ne.s32.totalorder %s155, %s169
    %p171 = scmp.eq.s32.totalorder %s19, 0
    %p172 = por %p170, %p171
    %s173 = ssub.s32 %s13, %s20
    %p174 = scmp.eq.s32.totalorder %s173, 0
    %s176 = sadd.s32 %s175, 1
    %s177 = scalar_select %p174, %s175, %s176
    %p180 = pneg %p174
    %p181 = scmp.eq.s32.totalorder %s13, 1
    %p182 = por %p180, %p181
    %p183 = scmp.ne.s32.totalorder %s175, %s178
    %p184 = scmp.eq.s32.totalorder %s13, 0
    %p185 = por %p183, %p184
    %p186 = scmp.ne.s32.totalorder %s175, %s178
    %p187 = scmp.eq.s32.totalorder %s18, 1
    %p188 = por %p186, %p187
    %p189 = scmp.ne.s32.totalorder %s178, %s179
    %p190 = scmp.eq.s32.totalorder %s18, 0
    %p191 = por %p189, %p190
    %p192 = scmp.ne.s32.totalorder %s178, %s179
    %p193 = scmp.eq.s32.totalorder %s19, 1
    %p194 = por %p192, %p193
    %p196 = scmp.ne.s32.totalorder %s179, %s195
    %p197 = scmp.eq.s32.totalorder %s19, 0
    %p198 = por %p196, %p197
    %p199 = scmp.le.s32.totalorder 1, %s13
    %p200 = scmp.lt.s32.totalorder %s13, 3
    %p201 = pnand %p199, %p200
    %p202 = pneg %p201
    // Predicated region
    $region9: #{mlp_forward_pallas.1} parent=5 // pred_check
      _
    $region10: #{mlp_forward_pallas.1} parent=5 // pred_check_branch
      %204 = sbr.rel (%p201) target = $region12
    $region11: #{mlp_forward_pallas.1} parent=5 // pred_region
      %s205 = ssub.s32 %s13, 1
      // Predicated region
      $region13: #{mlp_forward_pallas.1} parent=11 // pred_check
        %p206 = pneg %p60
      $region14: #{mlp_forward_pallas.1} parent=11 // pred_check_branch
        %208 = sbr.rel (%p206) target = $region16
      $region15: #{mlp_forward_pallas.1} parent=11 // pred_region
        _
      $region16: #{mlp_forward_pallas.1} parent=11 // pred_fallthru
        _
      // Predicated region
      $region17: #{mlp_forward_pallas.1} parent=11 // pred_check
        %p209 = pneg %p81
      $region18: #{mlp_forward_pallas.1} parent=11 // pred_check_branch
        %211 = sbr.rel (%p209) target = $region20
      $region19: #{mlp_forward_pallas.1} parent=11 // pred_region
        _
      $region20: #{mlp_forward_pallas.1} parent=11 // pred_fallthru
        _
      // Predicated region
      $region21: #{mlp_forward_pallas.1} parent=11 // pred_check
        %p212 = pneg %p102
      $region22: #{mlp_forward_pallas.1} parent=11 // pred_check_branch
        %214 = sbr.rel (%p212) target = $region24
      $region23: #{mlp_forward_pallas.1} parent=11 // pred_region
        _
      $region24: #{mlp_forward_pallas.1} parent=11 // pred_fallthru
        _
      // Predicated region
      $region25: #{mlp_forward_pallas.1} parent=11 // pred_check
        %p215 = pneg %p123
      $region26: #{mlp_forward_pallas.1} parent=11 // pred_check_branch
        %217 = sbr.rel (%p215) target = $region28
      $region27: #{mlp_forward_pallas.1} parent=11 // pred_region
        _
      $region28: #{mlp_forward_pallas.1} parent=11 // pred_fallthru
        _
      // Predicated region
      $region29: #{mlp_forward_pallas.1} parent=11 // pred_check
        %p218 = pneg %p144
      $region30: #{mlp_forward_pallas.1} parent=11 // pred_check_branch
        %220 = sbr.rel (%p218) target = $region32
      $region31: #{mlp_forward_pallas.1} parent=11 // pred_region
        _
      $region32: #{mlp_forward_pallas.1} parent=11 // pred_fallthru
        _
      // Predicated region
      $region33: #{mlp_forward_pallas.1} parent=11 // pred_check
        %p221 = pneg %p165
      $region34: #{mlp_forward_pallas.1} parent=11 // pred_check_branch
        %223 = sbr.rel (%p221) target = $region36
      $region35: #{mlp_forward_pallas.1} parent=11 // pred_region
        _
      $region36: #{mlp_forward_pallas.1} parent=11 // pred_fallthru
        _
    $region12: #{mlp_forward_pallas.1} parent=5 // pred_fallthru
      _
    %p224 = scmp.lt.s32.totalorder %s13, 2
    // Predicated region
    $region37: #{mlp_forward_pallas.1} parent=5 // pred_check
      %p225 = pneg %p224
    $region38: #{mlp_forward_pallas.1} parent=5 // pred_check_branch
      %227 = sbr.rel (%p225) target = $region40
    $region39: #{mlp_forward_pallas.1} parent=5 // pred_region
      // Predicated region
      $region41: #{mlp_forward_pallas.1} parent=39 // pred_check
        %p228 = pneg %p33
      $region42: #{mlp_forward_pallas.1} parent=39 // pred_check_branch
        %230 = sbr.rel (%p228) target = $region44
      $region43: #{mlp_forward_pallas.1} parent=39 // pred_region
        %p231 = scmp.lt.s32.totalorder %s13, 1
        %s232 = scalar_select %p231, %s13, 1
        %s233 = smul.addr %s232, 8
        %s234 = scalar_lea.vmem %s0, %s233
      $region44: #{mlp_forward_pallas.1} parent=39 // pred_fallthru
        _
    $region40: #{mlp_forward_pallas.1} parent=5 // pred_fallthru
      _
    %p235 = scmp.le.s32.totalorder 1, %s13
    %p236 = scmp.lt.s32.totalorder %s13, 3
    %p237 = pnand %p235, %p236
    %p238 = pneg %p237
    // Predicated region
    $region45: #{mlp_forward_pallas.1} parent=5 // pred_check
      _
    $region46: #{mlp_forward_pallas.1} parent=5 // pred_check_branch
      %240 = sbr.rel (%p237) target = $region48
    $region47: #{mlp_forward_pallas.1} parent=5 // pred_region
      %s241 = ssub.s32 %s13, 1
      %p242 = scmp.lt.s32.totalorder %s18, 1
      %s243 = scalar_select %p242, %s18, 1
      %s244 = smul.addr %s243, 8
      %s245 = scalar_lea.vmem %s0, %s244
      %p246 = pneg %p39
      %p247 = pneg %p36
      %p248 = pneg %p60
      %p249 = pneg %p57
      %p250 = pneg %p81
      %p251 = pneg %p78
      %p252 = pneg %p102
      %p253 = pneg %p99
      %p254 = pneg %p123
      %p255 = pneg %p120
      %p256 = pneg %p144
      %p257 = pneg %p141
      %p258 = pneg %p165
      %p259 = pneg %p162
      %p260 = pneg %p191
      %p261 = pneg %p188
      %p262 = scmp.lt.s32.totalorder %s18, 1
      %s263 = scalar_select %p262, %s18, 1
      %s264 = smul.addr %s263, 8
      %s265 = scalar_lea.vmem %s7, %s264
      %p266 = scmp.lt.s32.totalorder %s18, 1
      %s267 = scalar_select %p266, %s18, 1
      %s268 = smul.addr %s267, 8
      %s269 = scalar_lea.vmem %s0, %s268
      %p270 = scmp.lt.s32.totalorder %s18, 1
      %s271 = scalar_select %p270, %s18, 1
      %s272 = smul.addr %s271, 8
      %s273 = scalar_lea.vmem %s7, %s272
      %v274 = vld [vmem:[%s269] sm:$0xff]
      %v275 = vld [vmem:[%s1] sm:$0xff]
      %v276 = vld [vmem:[%s1 + $0x8] sm:$0xff]
      %v277 = vld [vmem:[%s1 + $0x10] sm:$0xff]
      %v278 = vld [vmem:[%s1 + $0x18] sm:$0xff]
      %v279 = vld [vmem:[%s1 + $0x20] sm:$0xff]
      %v280 = vld [vmem:[%s1 + $0x28] sm:$0xff]
      %v281 = vld [vmem:[%s1 + $0x30] sm:$0xff]
      %v282 = vld [vmem:[%s1 + $0x38] sm:$0xff]
      %v283 = vld [vmem:[%s1 + $0x40] sm:$0xff]
      %v284 = vld [vmem:[%s1 + $0x48] sm:$0xff]
      %v285 = vld [vmem:[%s1 + $0x50] sm:$0xff]
      %v286 = vld [vmem:[%s1 + $0x58] sm:$0xff]
      %v287 = vld [vmem:[%s1 + $0x60] sm:$0xff]
      %v288 = vld [vmem:[%s1 + $0x68] sm:$0xff]
      %v289 = vld [vmem:[%s1 + $0x70] sm:$0xff]
      %v290 = vld [vmem:[%s1 + $0x78] sm:$0xff]
      %v291 = vld [vmem:[%s2] sm:$0x1]
      %v293 = vlaneseq
      %v294 = vshrl.u32 %v293, 7
      %v295 = vsub.s32 0, %v294
      %v296 = vrot.slane %v291, %v295
      %298 = vmatprep.subr.mxu0 0.0
      %299 = vmatpush1.msra.mxu0 %v290
      %300 = vmatprep.subr.mxu0 0.0
      %301 = vmatpush1.msra.mxu0 %v289
      %302 = vmatprep.subr.mxu0 0.0
      %303 = vmatpush1.msra.mxu0 %v288
      %304 = vmatprep.subr.mxu0 0.0
      %305 = vmatpush1.msra.mxu0 %v287
      %306 = vmatprep.subr.mxu0 0.0
      %307 = vmatpush1.msra.mxu0 %v286
      %308 = vmatprep.subr.mxu0 0.0
      %309 = vmatpush1.msra.mxu0 %v285
      %310 = vmatprep.subr.mxu0 0.0
      %311 = vmatpush1.msra.mxu0 %v284
      %312 = vmatprep.subr.mxu0 0.0
      %313 = vmatpush1.msra.mxu0 %v283
      %314 = vmatprep.subr.mxu0 0.0
      %315 = vmatpush1.msra.mxu0 %v282
      %316 = vmatprep.subr.mxu0 0.0
      %317 = vmatpush1.msra.mxu0 %v281
      %318 = vmatprep.subr.mxu0 0.0
      %319 = vmatpush1.msra.mxu0 %v280
      %320 = vmatprep.subr.mxu0 0.0
      %321 = vmatpush1.msra.mxu0 %v279
      %322 = vmatprep.subr.mxu0 0.0
      %323 = vmatpush1.msra.mxu0 %v278
      %324 = vmatprep.subr.mxu0 0.0
      %325 = vmatpush1.msra.mxu0 %v277
      %326 = vmatprep.subr.mxu0 0.0
      %327 = vmatpush1.msra.mxu0 %v276
      %328 = vmatprep.subr.mxu0 0.0
      %329 = vmatpush1.msra.mxu0 %v275
      %330 = vmatprep.subr.mxu0 0.0
      %331 = vmatpush2.msra.mxu0 0.0
      %332 = vmatprep.subr.mxu0 0.0
      %333 = vmatpush2.msra.mxu0 0.0
      %334 = vmatprep.subr.mxu0 0.0
      %335 = vmatpush2.msra.mxu0 0.0
      %336 = vmatprep.subr.mxu0 0.0
      %337 = vmatpush2.msra.mxu0 0.0
      %338 = vmatprep.subr.mxu0 0.0
      %339 = vmatpush2.msra.mxu0 0.0
      %340 = vmatprep.subr.mxu0 0.0
      %341 = vmatpush2.msra.mxu0 0.0
      %342 = vmatprep.subr.mxu0 0.0
      %343 = vmatpush2.msra.mxu0 0.0
      %344 = vmatprep.subr.mxu0 0.0
      %345 = vmatpush2.msra.mxu0 0.0
      %346 = vmatprep.subr.mxu0 0.0
      %347 = vmatpush2.msra.mxu0 0.0
      %348 = vmatprep.subr.mxu0 0.0
      %349 = vmatpush2.msra.mxu0 0.0
      %350 = vmatprep.subr.mxu0 0.0
      %351 = vmatpush2.msra.mxu0 0.0
      %352 = vmatprep.subr.mxu0 0.0
      %353 = vmatpush2.msra.mxu0 0.0
      %354 = vmatprep.subr.mxu0 0.0
      %355 = vmatpush2.msra.mxu0 0.0
      %356 = vmatprep.subr.mxu0 0.0
      %357 = vmatpush2.msra.mxu0 0.0
      %358 = vmatprep.subr.mxu0 0.0
      %359 = vmatpush2.msra.mxu0 0.0
      %360 = vmatprep.subr.mxu0 0.0
      %361 = vmatpush2.msra.mxu0 0.0
      %362 = vmatprep.mubr.f32.mxu0 0.0
      %363 = vmatmul.mubr.f32.gmra.mxu0 %v274
      %v364 = vpop.f32.mrf.mxu0
      %v365 = vadd.f32 %v296, %v364
      %v366 = vpop.f32.mrf.mxu0
      %367 = vdwg.mxu0
      %v368 = vmax.f32 %v365, 0.0
      %v369 = vld [vmem:[%s3] sm:$0xff]
      %v370 = vld [vmem:[%s3 + $0x8] sm:$0xff]
      %v371 = vld [vmem:[%s3 + $0x10] sm:$0xff]
      %v372 = vld [vmem:[%s3 + $0x18] sm:$0xff]
      %v373 = vld [vmem:[%s3 + $0x20] sm:$0xff]
      %v374 = vld [vmem:[%s3 + $0x28] sm:$0xff]
      %v375 = vld [vmem:[%s3 + $0x30] sm:$0xff]
      %v376 = vld [vmem:[%s3 + $0x38] sm:$0xff]
      %v377 = vld [vmem:[%s3 + $0x40] sm:$0xff]
      %v378 = vld [vmem:[%s3 + $0x48] sm:$0xff]
      %v379 = vld [vmem:[%s3 + $0x50] sm:$0xff]
      %v380 = vld [vmem:[%s3 + $0x58] sm:$0xff]
      %v381 = vld [vmem:[%s3 + $0x60] sm:$0xff]
      %v382 = vld [vmem:[%s3 + $0x68] sm:$0xff]
      %v383 = vld [vmem:[%s3 + $0x70] sm:$0xff]
      %v384 = vld [vmem:[%s3 + $0x78] sm:$0xff]
      %v385 = vld [vmem:[%s4] sm:$0x1]
      %v387 = vlaneseq
      %v388 = vshrl.u32 %v387, 7
      %v389 = vsub.s32 0, %v388
      %v390 = vrot.slane %v385, %v389
      %392 = vmatprep.subr.mxu0 0.0
      %393 = vmatpush1.msra.mxu0 %v384
      %394 = vmatprep.subr.mxu0 0.0
      %395 = vmatpush1.msra.mxu0 %v383
      %396 = vmatprep.subr.mxu0 0.0
      %397 = vmatpush1.msra.mxu0 %v382
      %398 = vmatprep.subr.mxu0 0.0
      %399 = vmatpush1.msra.mxu0 %v381
      %400 = vmatprep.subr.mxu0 0.0
      %401 = vmatpush1.msra.mxu0 %v380
      %402 = vmatprep.subr.mxu0 0.0
      %403 = vmatpush1.msra.mxu0 %v379
      %404 = vmatprep.subr.mxu0 0.0
      %405 = vmatpush1.msra.mxu0 %v378
      %406 = vmatprep.subr.mxu0 0.0
      %407 = vmatpush1.msra.mxu0 %v377
      %408 = vmatprep.subr.mxu0 0.0
      %409 = vmatpush1.msra.mxu0 %v376
      %410 = vmatprep.subr.mxu0 0.0
      %411 = vmatpush1.msra.mxu0 %v375
      %412 = vmatprep.subr.mxu0 0.0
      %413 = vmatpush1.msra.mxu0 %v374
      %414 = vmatprep.subr.mxu0 0.0
      %415 = vmatpush1.msra.mxu0 %v373
      %416 = vmatprep.subr.mxu0 0.0
      %417 = vmatpush1.msra.mxu0 %v372
      %418 = vmatprep.subr.mxu0 0.0
      %419 = vmatpush1.msra.mxu0 %v371
      %420 = vmatprep.subr.mxu0 0.0
      %421 = vmatpush1.msra.mxu0 %v370
      %422 = vmatprep.subr.mxu0 0.0
      %423 = vmatpush1.msra.mxu0 %v369
      %424 = vmatprep.subr.mxu0 0.0
      %425 = vmatpush2.msra.mxu0 0.0
      %426 = vmatprep.subr.mxu0 0.0
      %427 = vmatpush2.msra.mxu0 0.0
      %428 = vmatprep.subr.mxu0 0.0
      %429 = vmatpush2.msra.mxu0 0.0
      %430 = vmatprep.subr.mxu0 0.0
      %431 = vmatpush2.msra.mxu0 0.0
      %432 = vmatprep.subr.mxu0 0.0
      %433 = vmatpush2.msra.mxu0 0.0
      %434 = vmatprep.subr.mxu0 0.0
      %435 = vmatpush2.msra.mxu0 0.0
      %436 = vmatprep.subr.mxu0 0.0
      %437 = vmatpush2.msra.mxu0 0.0
      %438 = vmatprep.subr.mxu0 0.0
      %439 = vmatpush2.msra.mxu0 0.0
      %440 = vmatprep.subr.mxu0 0.0
      %441 = vmatpush2.msra.mxu0 0.0
      %442 = vmatprep.subr.mxu0 0.0
      %443 = vmatpush2.msra.mxu0 0.0
      %444 = vmatprep.subr.mxu0 0.0
      %445 = vmatpush2.msra.mxu0 0.0
      %446 = vmatprep.subr.mxu0 0.0
      %447 = vmatpush2.msra.mxu0 0.0
      %448 = vmatprep.subr.mxu0 0.0
      %449 = vmatpush2.msra.mxu0 0.0
      %450 = vmatprep.subr.mxu0 0.0
      %451 = vmatpush2.msra.mxu0 0.0
      %452 = vmatprep.subr.mxu0 0.0
      %453 = vmatpush2.msra.mxu0 0.0
      %454 = vmatprep.subr.mxu0 0.0
      %455 = vmatpush2.msra.mxu0 0.0
      %456 = vmatprep.mubr.f32.mxu0 0.0
      %457 = vmatmul.mubr.f32.gmra.mxu0 %v368
      %v458 = vpop.f32.mrf.mxu0
      %v459 = vadd.f32 %v390, %v458
      %v460 = vpop.f32.mrf.mxu0
      %461 = vdwg.mxu0
      %v462 = vmax.f32 %v459, 0.0
      %v463 = vld [vmem:[%s5] sm:$0xff]
      %v464 = vld [vmem:[%s5 + $0x8] sm:$0xff]
      %v465 = vld [vmem:[%s5 + $0x10] sm:$0xff]
      %v466 = vld [vmem:[%s5 + $0x18] sm:$0xff]
      %v467 = vld [vmem:[%s5 + $0x20] sm:$0xff]
      %v468 = vld [vmem:[%s5 + $0x28] sm:$0xff]
      %v469 = vld [vmem:[%s5 + $0x30] sm:$0xff]
      %v470 = vld [vmem:[%s5 + $0x38] sm:$0xff]
      %v471 = vld [vmem:[%s5 + $0x40] sm:$0xff]
      %v472 = vld [vmem:[%s5 + $0x48] sm:$0xff]
      %v473 = vld [vmem:[%s5 + $0x50] sm:$0xff]
      %v474 = vld [vmem:[%s5 + $0x58] sm:$0xff]
      %v475 = vld [vmem:[%s5 + $0x60] sm:$0xff]
      %v476 = vld [vmem:[%s5 + $0x68] sm:$0xff]
      %v477 = vld [vmem:[%s5 + $0x70] sm:$0xff]
      %v478 = vld [vmem:[%s5 + $0x78] sm:$0xff]
      %v479 = vld [vmem:[%s6] sm:$0x1]
      %v481 = vlaneseq
      %v482 = vshrl.u32 %v481, 7
      %v483 = vsub.s32 0, %v482
      %v484 = vrot.slane %v479, %v483
      %486 = vmatprep.subr.mxu0 0.0
      %487 = vmatpush1.msra.mxu0 %v478
      %488 = vmatprep.subr.mxu0 0.0
      %489 = vmatpush1.msra.mxu0 %v477
      %490 = vmatprep.subr.mxu0 0.0
      %491 = vmatpush1.msra.mxu0 %v476
      %492 = vmatprep.subr.mxu0 0.0
      %493 = vmatpush1.msra.mxu0 %v475
      %494 = vmatprep.subr.mxu0 0.0
      %495 = vmatpush1.msra.mxu0 %v474
      %496 = vmatprep.subr.mxu0 0.0
      %497 = vmatpush1.msra.mxu0 %v473
      %498 = vmatprep.subr.mxu0 0.0
      %499 = vmatpush1.msra.mxu0 %v472
      %500 = vmatprep.subr.mxu0 0.0
      %501 = vmatpush1.msra.mxu0 %v471
      %502 = vmatprep.subr.mxu0 0.0
      %503 = vmatpush1.msra.mxu0 %v470
      %504 = vmatprep.subr.mxu0 0.0
      %505 = vmatpush1.msra.mxu0 %v469
      %506 = vmatprep.subr.mxu0 0.0
      %507 = vmatpush1.msra.mxu0 %v468
      %508 = vmatprep.subr.mxu0 0.0
      %509 = vmatpush1.msra.mxu0 %v467
      %510 = vmatprep.subr.mxu0 0.0
      %511 = vmatpush1.msra.mxu0 %v466
      %512 = vmatprep.subr.mxu0 0.0
      %513 = vmatpush1.msra.mxu0 %v465
      %514 = vmatprep.subr.mxu0 0.0
      %515 = vmatpush1.msra.mxu0 %v464
      %516 = vmatprep.subr.mxu0 0.0
      %517 = vmatpush1.msra.mxu0 %v463
      %518 = vmatprep.subr.mxu0 0.0
      %519 = vmatpush2.msra.mxu0 0.0
      %520 = vmatprep.subr.mxu0 0.0
      %521 = vmatpush2.msra.mxu0 0.0
      %522 = vmatprep.subr.mxu0 0.0
      %523 = vmatpush2.msra.mxu0 0.0
      %524 = vmatprep.subr.mxu0 0.0
      %525 = vmatpush2.msra.mxu0 0.0
      %526 = vmatprep.subr.mxu0 0.0
      %527 = vmatpush2.msra.mxu0 0.0
      %528 = vmatprep.subr.mxu0 0.0
      %529 = vmatpush2.msra.mxu0 0.0
      %530 = vmatprep.subr.mxu0 0.0
      %531 = vmatpush2.msra.mxu0 0.0
      %532 = vmatprep.subr.mxu0 0.0
      %533 = vmatpush2.msra.mxu0 0.0
      %534 = vmatprep.subr.mxu0 0.0
      %535 = vmatpush2.msra.mxu0 0.0
      %536 = vmatprep.subr.mxu0 0.0
      %537 = vmatpush2.msra.mxu0 0.0
      %538 = vmatprep.subr.mxu0 0.0
      %539 = vmatpush2.msra.mxu0 0.0
      %540 = vmatprep.subr.mxu0 0.0
      %541 = vmatpush2.msra.mxu0 0.0
      %542 = vmatprep.subr.mxu0 0.0
      %543 = vmatpush2.msra.mxu0 0.0
      %544 = vmatprep.subr.mxu0 0.0
      %545 = vmatpush2.msra.mxu0 0.0
      %546 = vmatprep.subr.mxu0 0.0
      %547 = vmatpush2.msra.mxu0 0.0
      %548 = vmatprep.subr.mxu0 0.0
      %549 = vmatpush2.msra.mxu0 0.0
      %550 = vmatprep.mubr.f32.mxu0 0.0
      %551 = vmatmul.mubr.f32.gmra.mxu0 %v462
      %v552 = vpop.f32.mrf.mxu0
      %v553 = vadd.f32 %v484, %v552
      %v554 = vpop.f32.mrf.mxu0
      %555 = vdwg.mxu0
      %556 = vst [vmem:[%s273] sm:$0xff] %v553
      %p557 = scmp.lt.s32.totalorder %s18, 1
      %s558 = scalar_select %p557, %s18, 1
      %s559 = smul.addr %s558, 8
      %s560 = scalar_lea.vmem %s7, %s559
      // Predicated region
      $region49: #{mlp_forward_pallas.1} parent=47 // pred_check
        %p561 = pneg %p188
      $region50: #{mlp_forward_pallas.1} parent=47 // pred_check_branch
        %563 = sbr.rel (%p561) target = $region52
      $region51: #{mlp_forward_pallas.1} parent=47 // pred_region
        _
      $region52: #{mlp_forward_pallas.1} parent=47 // pred_fallthru
        _
    $region48: #{mlp_forward_pallas.1} parent=5 // pred_fallthru
      _
    %p564 = scmp.le.s32.totalorder 2, %s13
    // Predicated region
    $region53: #{mlp_forward_pallas.1} parent=5 // pred_check
      %p565 = pneg %p564
    $region54: #{mlp_forward_pallas.1} parent=5 // pred_check_branch
      %567 = sbr.rel (%p565) target = $region56
    $region55: #{mlp_forward_pallas.1} parent=5 // pred_region
      %s568 = ssub.s32 %s13, 2
      // Predicated region
      $region57: #{mlp_forward_pallas.1} parent=55 // pred_check
        %p569 = pneg %p194
      $region58: #{mlp_forward_pallas.1} parent=55 // pred_check_branch
        %571 = sbr.rel (%p569) target = $region60
      $region59: #{mlp_forward_pallas.1} parent=55 // pred_region
        %p572 = scmp.lt.s32.totalorder %s19, 1
        %s573 = scalar_select %p572, %s19, 1
        %s574 = smul.addr %s573, 8
        %s575 = scalar_lea.vmem %s7, %s574
      $region60: #{mlp_forward_pallas.1} parent=55 // pred_fallthru
        _
    $region56: #{mlp_forward_pallas.1} parent=5 // pred_fallthru
      _
  $region6: #{mlp_forward_pallas.1} parent=0 // loop_footer
    %s17 = sadd.s32 1, %s13
  $region7: #{mlp_forward_pallas.1} parent=0 // loop_footer_branch
    %12 = sbr.rel target = $region3
  $region8: #{mlp_forward_pallas.1} parent=0 // loop_exit
    _

// kernel: mlp_forward_pallas.1
$region0: #{mlp_forward_pallas.1}
  #allocation0 [shape = 'u32[]', space=smem, size = 0x4, offset = 0x4, fixed_abs, tag = 'smem constant byte address 0x4 - core index']
  #allocation1 [shape = 'u32[144,128]{1,0:T(1,128)}', space=vmem, size = 0x12000, scoped, tag = 'internal scratch']
  %s0 = inlined_call_operand.vmem [shape: f32[16,128], index: 0, kind: input, shape index: {}]
  %s1 = inlined_call_operand.vmem [shape: f32[128,128], index: 1, kind: input, shape index: {}]
  %s2 = inlined_call_operand.vmem [shape: f32[1,128], index: 2, kind: input, shape index: {}]
  %s3 = inlined_call_operand.vmem [shape: f32[128,128], index: 3, kind: input, shape index: {}]
  %s4 = inlined_call_operand.vmem [shape: f32[1,128], index: 4, kind: input, shape index: {}]
  %s5 = inlined_call_operand.vmem [shape: f32[128,128], index: 5, kind: input, shape index: {}]
  %s6 = inlined_call_operand.vmem [shape: f32[1,128], index: 6, kind: input, shape index: {}]
  %s7 = inlined_call_operand.vmem [shape: f32[16,128], index: 7, kind: output, shape index: {}]
  %s8 = sld [smem:[#allocation0]]
  $region61: #{mlp_forward_pallas.1} parent=0
    _
  %s10 = ssub.s32 1, %s8
  %s11 = scalar_select 0, %s10, %s8
  loop: start=0, step=1, limit=4
  $region2: #{mlp_forward_pallas.1} parent=0 // loop_pre_header
    _
  $region3: #{mlp_forward_pallas.1} parent=0 // loop_header
    %s13 = sphi 0, %s17
    %p14 = scmp.ge.s32.totalorder %s13, 4
    %s23 = sphi 0, %s25
    %s26 = sphi 0, %s23
    %s27 = sphi 0, %s26
    %s43 = sphi 0, %s27
    %s47 = sphi 0, %s47
    %s49 = sphi 0, %s47
    %s50 = sphi 0, %s49
    %s64 = sphi 0, %s50
    %s68 = sphi 0, %s68
    %s70 = sphi 0, %s68
    %s71 = sphi 0, %s70
    %s85 = sphi 0, %s71
    %s89 = sphi 0, %s89
    %s91 = sphi 0, %s89
    %s92 = sphi 0, %s91
    %s106 = sphi 0, %s92
    %s110 = sphi 0, %s110
    %s112 = sphi 0, %s110
    %s113 = sphi 0, %s112
    %s127 = sphi 0, %s113
    %s131 = sphi 0, %s131
    %s133 = sphi 0, %s131
    %s134 = sphi 0, %s133
    %s148 = sphi 0, %s134
    %s152 = sphi 0, %s152
    %s154 = sphi 0, %s152
    %s155 = sphi 0, %s154
    %s169 = sphi 0, %s155
    %s175 = sphi 0, %s177
    %s178 = sphi 0, %s175
    %s179 = sphi 0, %s178
    %s195 = sphi 0, %s179
  $region4: #{mlp_forward_pallas.1} parent=0 // loop_header_branch
    %16 = sbr.rel (%p14) target = $region8
  $region5: #{mlp_forward_pallas.1} parent=0 // loop_body
    %s18 = ssub.s32 %s13, 1
    %s19 = ssub.s32 %s13, 2
    %s20 = sadd.s32 %s13, 1
    %s21 = ssub.s32 %s13, %s20
    %p22 = scmp.eq.s32.totalorder %s21, 0
    %s24 = sadd.s32 %s23, 1
    %s25 = scalar_select %p22, %s23, %s24
    %p28 = pneg %p22
    %p29 = scmp.eq.s32.totalorder %s13, 1
    %p30 = por %p28, %p29
    %p31 = scmp.ne.s32.totalorder %s23, %s26
    %p32 = scmp.eq.s32.totalorder %s13, 0
    %p33 = por %p31, %p32
    %p34 = scmp.ne.s32.totalorder %s23, %s26
    %p35 = scmp.eq.s32.totalorder %s18, 1
    %p36 = por %p34, %p35
    %p37 = scmp.ne.s32.totalorder %s26, %s27
    %p38 = scmp.eq.s32.totalorder %s18, 0
    %p39 = por %p37, %p38
    %p40 = scmp.ne.s32.totalorder %s26, %s27
    %p41 = scmp.eq.s32.totalorder %s19, 1
    %p42 = por %p40, %p41
    %p44 = scmp.ne.s32.totalorder %s27, %s43
    %p45 = scmp.eq.s32.totalorder %s19, 0
    %p46 = por %p44, %p45
    %s48 = sadd.s32 %s47, 1
    %p51 = scmp.eq.s32.totalorder %s13, 1
    %p52 = scmp.ne.s32.totalorder %s47, %s49
    %p53 = scmp.eq.s32.totalorder %s13, 0
    %p54 = por %p52, %p53
    %p55 = scmp.ne.s32.totalorder %s47, %s49
    %p56 = scmp.eq.s32.totalorder %s18, 1
    %p57 = por %p55, %p56
    %p58 = scmp.ne.s32.totalorder %s49, %s50
    %p59 = scmp.eq.s32.totalorder %s18, 0
    %p60 = por %p58, %p59
    %p61 = scmp.ne.s32.totalorder %s49, %s50
    %p62 = scmp.eq.s32.totalorder %s19, 1
    %p63 = por %p61, %p62
    %p65 = scmp.ne.s32.totalorder %s50, %s64
    %p66 = scmp.eq.s32.totalorder %s19, 0
    %p67 = por %p65, %p66
    %s69 = sadd.s32 %s68, 1
    %p72 = scmp.eq.s32.totalorder %s13, 1
    %p73 = scmp.ne.s32.totalorder %s68, %s70
    %p74 = scmp.eq.s32.totalorder %s13, 0
    %p75 = por %p73, %p74
    %p76 = scmp.ne.s32.totalorder %s68, %s70
    %p77 = scmp.eq.s32.totalorder %s18, 1
    %p78 = por %p76, %p77
    %p79 = scmp.ne.s32.totalorder %s70, %s71
    %p80 = scmp.eq.s32.totalorder %s18, 0
    %p81 = por %p79, %p80
    %p82 = scmp.ne.s32.totalorder %s70, %s71
    %p83 = scmp.eq.s32.totalorder %s19, 1
    %p84 = por %p82, %p83
    %p86 = scmp.ne.s32.totalorder %s71, %s85
    %p87 = scmp.eq.s32.totalorder %s19, 0
    %p88 = por %p86, %p87
    %s90 = sadd.s32 %s89, 1
    %p93 = scmp.eq.s32.totalorder %s13, 1
    %p94 = scmp.ne.s32.totalorder %s89, %s91
    %p95 = scmp.eq.s32.totalorder %s13, 0
    %p96 = por %p94, %p95
    %p97 = scmp.ne.s32.totalorder %s89, %s91
    %p98 = scmp.eq.s32.totalorder %s18, 1
    %p99 = por %p97, %p98
    %p100 = scmp.ne.s32.totalorder %s91, %s92
    %p101 = scmp.eq.s32.totalorder %s18, 0
    %p102 = por %p100, %p101
    %p103 = scmp.ne.s32.totalorder %s91, %s92
    %p104 = scmp.eq.s32.totalorder %s19, 1
    %p105 = por %p103, %p104
    %p107 = scmp.ne.s32.totalorder %s92, %s106
    %p108 = scmp.eq.s32.totalorder %s19, 0
    %p109 = por %p107, %p108
    %s111 = sadd.s32 %s110, 1
    %p114 = scmp.eq.s32.totalorder %s13, 1
    %p115 = scmp.ne.s32.totalorder %s110, %s112
    %p116 = scmp.eq.s32.totalorder %s13, 0
    %p117 = por %p115, %p116
    %p118 = scmp.ne.s32.totalorder %s110, %s112
    %p119 = scmp.eq.s32.totalorder %s18, 1
    %p120 = por %p118, %p119
    %p121 = scmp.ne.s32.totalorder %s112, %s113
    %p122 = scmp.eq.s32.totalorder %s18, 0
    %p123 = por %p121, %p122
    %p124 = scmp.ne.s32.totalorder %s112, %s113
    %p125 = scmp.eq.s32.totalorder %s19, 1
    %p126 = por %p124, %p125
    %p128 = scmp.ne.s32.totalorder %s113, %s127
    %p129 = scmp.eq.s32.totalorder %s19, 0
    %p130 = por %p128, %p129
    %s132 = sadd.s32 %s131, 1
    %p135 = scmp.eq.s32.totalorder %s13, 1
    %p136 = scmp.ne.s32.totalorder %s131, %s133
    %p137 = scmp.eq.s32.totalorder %s13, 0
    %p138 = por %p136, %p137
    %p139 = scmp.ne.s32.totalorder %s131, %s133
    %p140 = scmp.eq.s32.totalorder %s18, 1
    %p141 = por %p139, %p140
    %p142 = scmp.ne.s32.totalorder %s133, %s134
    %p143 = scmp.eq.s32.totalorder %s18, 0
    %p144 = por %p142, %p143
    %p145 = scmp.ne.s32.totalorder %s133, %s134
    %p146 = scmp.eq.s32.totalorder %s19, 1
    %p147 = por %p145, %p146
    %p149 = scmp.ne.s32.totalorder %s134, %s148
    %p150 = scmp.eq.s32.totalorder %s19, 0
    %p151 = por %p149, %p150
    %s153 = sadd.s32 %s152, 1
    %p156 = scmp.eq.s32.totalorder %s13, 1
    %p157 = scmp.ne.s32.totalorder %s152, %s154
    %p158 = scmp.eq.s32.totalorder %s13, 0
    %p159 = por %p157, %p158
    %p160 = scmp.ne.s32.totalorder %s152, %s154
    %p161 = scmp.eq.s32.totalorder %s18, 1
    %p162 = por %p160, %p161
    %p163 = scmp.ne.s32.totalorder %s154, %s155
    %p164 = scmp.eq.s32.totalorder %s18, 0
    %p165 = por %p163, %p164
    %p166 = scmp.ne.s32.totalorder %s154, %s155
    %p167 = scmp.eq.s32.totalorder %s19, 1
    %p168 = por %p166, %p167
    %p170 = scmp.ne.s32.totalorder %s155, %s169
    %p171 = scmp.eq.s32.totalorder %s19, 0
    %p172 = por %p170, %p171
    %s173 = ssub.s32 %s13, %s20
    %p174 = scmp.eq.s32.totalorder %s173, 0
    %s176 = sadd.s32 %s175, 1
    %s177 = scalar_select %p174, %s175, %s176
    %p180 = pneg %p174
    %p181 = scmp.eq.s32.totalorder %s13, 1
    %p182 = por %p180, %p181
    %p183 = scmp.ne.s32.totalorder %s175, %s178
    %p184 = scmp.eq.s32.totalorder %s13, 0
    %p185 = por %p183, %p184
    %p186 = scmp.ne.s32.totalorder %s175, %s178
    %p187 = scmp.eq.s32.totalorder %s18, 1
    %p188 = por %p186, %p187
    %p189 = scmp.ne.s32.totalorder %s178, %s179
    %p190 = scmp.eq.s32.totalorder %s18, 0
    %p191 = por %p189, %p190
    %p192 = scmp.ne.s32.totalorder %s178, %s179
    %p193 = scmp.eq.s32.totalorder %s19, 1
    %p194 = por %p192, %p193
    %p196 = scmp.ne.s32.totalorder %s179, %s195
    %p197 = scmp.eq.s32.totalorder %s19, 0
    %p198 = por %p196, %p197
    %p199 = scmp.le.s32.totalorder 1, %s13
    %p200 = scmp.lt.s32.totalorder %s13, 3
    %p201 = pnand %p199, %p200
    %p202 = pneg %p201
    // Predicated region
    $region9: #{mlp_forward_pallas.1} parent=5 // pred_check
      _
    $region10: #{mlp_forward_pallas.1} parent=5 // pred_check_branch
      %204 = sbr.rel (%p201) target = $region12
    $region11: #{mlp_forward_pallas.1} parent=5 // pred_region
      %s205 = ssub.s32 %s13, 1
      // Predicated region
      $region13: #{mlp_forward_pallas.1} parent=11 // pred_check
        %p206 = pneg %p60
      $region14: #{mlp_forward_pallas.1} parent=11 // pred_check_branch
        %208 = sbr.rel (%p206) target = $region16
      $region15: #{mlp_forward_pallas.1} parent=11 // pred_region
        _
      $region16: #{mlp_forward_pallas.1} parent=11 // pred_fallthru
        _
      // Predicated region
      $region17: #{mlp_forward_pallas.1} parent=11 // pred_check
        %p209 = pneg %p81
      $region18: #{mlp_forward_pallas.1} parent=11 // pred_check_branch
        %211 = sbr.rel (%p209) target = $region20
      $region19: #{mlp_forward_pallas.1} parent=11 // pred_region
        _
      $region20: #{mlp_forward_pallas.1} parent=11 // pred_fallthru
        _
      // Predicated region
      $region21: #{mlp_forward_pallas.1} parent=11 // pred_check
        %p212 = pneg %p102
      $region22: #{mlp_forward_pallas.1} parent=11 // pred_check_branch
        %214 = sbr.rel (%p212) target = $region24
      $region23: #{mlp_forward_pallas.1} parent=11 // pred_region
        _
      $region24: #{mlp_forward_pallas.1} parent=11 // pred_fallthru
        _
      // Predicated region
      $region25: #{mlp_forward_pallas.1} parent=11 // pred_check
        %p215 = pneg %p123
      $region26: #{mlp_forward_pallas.1} parent=11 // pred_check_branch
        %217 = sbr.rel (%p215) target = $region28
      $region27: #{mlp_forward_pallas.1} parent=11 // pred_region
        _
      $region28: #{mlp_forward_pallas.1} parent=11 // pred_fallthru
        _
      // Predicated region
      $region29: #{mlp_forward_pallas.1} parent=11 // pred_check
        %p218 = pneg %p144
      $region30: #{mlp_forward_pallas.1} parent=11 // pred_check_branch
        %220 = sbr.rel (%p218) target = $region32
      $region31: #{mlp_forward_pallas.1} parent=11 // pred_region
        _
      $region32: #{mlp_forward_pallas.1} parent=11 // pred_fallthru
        _
      // Predicated region
      $region33: #{mlp_forward_pallas.1} parent=11 // pred_check
        %p221 = pneg %p165
      $region34: #{mlp_forward_pallas.1} parent=11 // pred_check_branch
        %223 = sbr.rel (%p221) target = $region36
      $region35: #{mlp_forward_pallas.1} parent=11 // pred_region
        _
      $region36: #{mlp_forward_pallas.1} parent=11 // pred_fallthru
        _
    $region12: #{mlp_forward_pallas.1} parent=5 // pred_fallthru
      _
    %p224 = scmp.lt.s32.totalorder %s13, 2
    // Predicated region
    $region37: #{mlp_forward_pallas.1} parent=5 // pred_check
      %p225 = pneg %p224
    $region38: #{mlp_forward_pallas.1} parent=5 // pred_check_branch
      %227 = sbr.rel (%p225) target = $region40
    $region39: #{mlp_forward_pallas.1} parent=5 // pred_region
      // Predicated region
      $region41: #{mlp_forward_pallas.1} parent=39 // pred_check
        %p228 = pneg %p33
      $region42: #{mlp_forward_pallas.1} parent=39 // pred_check_branch
        %230 = sbr.rel (%p228) target = $region44
      $region43: #{mlp_forward_pallas.1} parent=39 // pred_region
        %p231 = scmp.lt.s32.totalorder %s13, 1
        %s232 = scalar_select %p231, %s13, 1
        %s233 = smul.addr %s232, 8
        %s234 = scalar_lea.vmem %s0, %s233
      $region44: #{mlp_forward_pallas.1} parent=39 // pred_fallthru
        _
    $region40: #{mlp_forward_pallas.1} parent=5 // pred_fallthru
      _
    %p235 = scmp.le.s32.totalorder 1, %s13
    %p236 = scmp.lt.s32.totalorder %s13, 3
    %p237 = pnand %p235, %p236
    %p238 = pneg %p237
    // Predicated region
    $region45: #{mlp_forward_pallas.1} parent=5 // pred_check
      _
    $region46: #{mlp_forward_pallas.1} parent=5 // pred_check_branch
      %240 = sbr.rel (%p237) target = $region48
    $region47: #{mlp_forward_pallas.1} parent=5 // pred_region
      %s241 = ssub.s32 %s13, 1
      %p242 = scmp.lt.s32.totalorder %s18, 1
      %s243 = scalar_select %p242, %s18, 1
      %s244 = smul.addr %s243, 8
      %s245 = scalar_lea.vmem %s0, %s244
      %p246 = pneg %p39
      %p247 = pneg %p36
      %p248 = pneg %p60
      %p249 = pneg %p57
      %p250 = pneg %p81
      %p251 = pneg %p78
      %p252 = pneg %p102
      %p253 = pneg %p99
      %p254 = pneg %p123
      %p255 = pneg %p120
      %p256 = pneg %p144
      %p257 = pneg %p141
      %p258 = pneg %p165
      %p259 = pneg %p162
      %p260 = pneg %p191
      %p261 = pneg %p188
      %p262 = scmp.lt.s32.totalorder %s18, 1
      %s263 = scalar_select %p262, %s18, 1
      %s264 = smul.addr %s263, 8
      %s265 = scalar_lea.vmem %s7, %s264
      %p266 = scmp.lt.s32.totalorder %s18, 1
      %s267 = scalar_select %p266, %s18, 1
      %s268 = smul.addr %s267, 8
      %s269 = scalar_lea.vmem %s0, %s268
      %p270 = scmp.lt.s32.totalorder %s18, 1
      %s271 = scalar_select %p270, %s18, 1
      %s272 = smul.addr %s271, 8
      %s273 = scalar_lea.vmem %s7, %s272
      %v274 = vld [vmem:[%s269] sm:$0xff]
      %v275 = vld [vmem:[%s1] sm:$0xff]
      %v276 = vld [vmem:[%s1 + $0x8] sm:$0xff]
      %v277 = vld [vmem:[%s1 + $0x10] sm:$0xff]
      %v278 = vld [vmem:[%s1 + $0x18] sm:$0xff]
      %v279 = vld [vmem:[%s1 + $0x20] sm:$0xff]
      %v280 = vld [vmem:[%s1 + $0x28] sm:$0xff]
      %v281 = vld [vmem:[%s1 + $0x30] sm:$0xff]
      %v282 = vld [vmem:[%s1 + $0x38] sm:$0xff]
      %v283 = vld [vmem:[%s1 + $0x40] sm:$0xff]
      %v284 = vld [vmem:[%s1 + $0x48] sm:$0xff]
      %v285 = vld [vmem:[%s1 + $0x50] sm:$0xff]
      %v286 = vld [vmem:[%s1 + $0x58] sm:$0xff]
      %v287 = vld [vmem:[%s1 + $0x60] sm:$0xff]
      %v288 = vld [vmem:[%s1 + $0x68] sm:$0xff]
      %v289 = vld [vmem:[%s1 + $0x70] sm:$0xff]
      %v290 = vld [vmem:[%s1 + $0x78] sm:$0xff]
      %v291 = vld [vmem:[%s2] sm:$0x1]
      %v293 = vlaneseq
      %v294 = vshrl.u32 %v293, 7
      %v295 = vsub.s32 0, %v294
      %v296 = vrot.slane %v291, %v295
      %298 = vmatprep.subr.mxu0 0.0
      %299 = vmatpush1.msra.mxu0 %v290
      %300 = vmatprep.subr.mxu0 0.0
      %301 = vmatpush1.msra.mxu0 %v289
      %302 = vmatprep.subr.mxu0 0.0
      %303 = vmatpush1.msra.mxu0 %v288
      %304 = vmatprep.subr.mxu0 0.0
      %305 = vmatpush1.msra.mxu0 %v287
      %306 = vmatprep.subr.mxu0 0.0
      %307 = vmatpush1.msra.mxu0 %v286
      %308 = vmatprep.subr.mxu0 0.0
      %309 = vmatpush1.msra.mxu0 %v285
      %310 = vmatprep.subr.mxu0 0.0
      %311 = vmatpush1.msra.mxu0 %v284
      %312 = vmatprep.subr.mxu0 0.0
      %313 = vmatpush1.msra.mxu0 %v283
      %314 = vmatprep.subr.mxu0 0.0
      %315 = vmatpush1.msra.mxu0 %v282
      %316 = vmatprep.subr.mxu0 0.0
      %317 = vmatpush1.msra.mxu0 %v281
      %318 = vmatprep.subr.mxu0 0.0
      %319 = vmatpush1.msra.mxu0 %v280
      %320 = vmatprep.subr.mxu0 0.0
      %321 = vmatpush1.msra.mxu0 %v279
      %322 = vmatprep.subr.mxu0 0.0
      %323 = vmatpush1.msra.mxu0 %v278
      %324 = vmatprep.subr.mxu0 0.0
      %325 = vmatpush1.msra.mxu0 %v277
      %326 = vmatprep.subr.mxu0 0.0
      %327 = vmatpush1.msra.mxu0 %v276
      %328 = vmatprep.subr.mxu0 0.0
      %329 = vmatpush1.msra.mxu0 %v275
      %330 = vmatprep.subr.mxu0 0.0
      %331 = vmatpush2.msra.mxu0 0.0
      %332 = vmatprep.subr.mxu0 0.0
      %333 = vmatpush2.msra.mxu0 0.0
      %334 = vmatprep.subr.mxu0 0.0
      %335 = vmatpush2.msra.mxu0 0.0
      %336 = vmatprep.subr.mxu0 0.0
      %337 = vmatpush2.msra.mxu0 0.0
      %338 = vmatprep.subr.mxu0 0.0
      %339 = vmatpush2.msra.mxu0 0.0
      %340 = vmatprep.subr.mxu0 0.0
      %341 = vmatpush2.msra.mxu0 0.0
      %342 = vmatprep.subr.mxu0 0.0
      %343 = vmatpush2.msra.mxu0 0.0
      %344 = vmatprep.subr.mxu0 0.0
      %345 = vmatpush2.msra.mxu0 0.0
      %346 = vmatprep.subr.mxu0 0.0
      %347 = vmatpush2.msra.mxu0 0.0
      %348 = vmatprep.subr.mxu0 0.0
      %349 = vmatpush2.msra.mxu0 0.0
      %350 = vmatprep.subr.mxu0 0.0
      %351 = vmatpush2.msra.mxu0 0.0
      %352 = vmatprep.subr.mxu0 0.0
      %353 = vmatpush2.msra.mxu0 0.0
      %354 = vmatprep.subr.mxu0 0.0
      %355 = vmatpush2.msra.mxu0 0.0
      %356 = vmatprep.subr.mxu0 0.0
      %357 = vmatpush2.msra.mxu0 0.0
      %358 = vmatprep.subr.mxu0 0.0
      %359 = vmatpush2.msra.mxu0 0.0
      %360 = vmatprep.subr.mxu0 0.0
      %361 = vmatpush2.msra.mxu0 0.0
      %362 = vmatprep.mubr.f32.mxu0 0.0
      %363 = vmatmul.mubr.f32.gmra.mxu0 %v274
      %v364 = vpop.f32.mrf.mxu0
      %v365 = vadd.f32 %v296, %v364
      %v366 = vpop.f32.mrf.mxu0
      %367 = vdwg.mxu0
      %v368 = vmax.f32 %v365, 0.0
      %v369 = vld [vmem:[%s3] sm:$0xff]
      %v370 = vld [vmem:[%s3 + $0x8] sm:$0xff]
      %v371 = vld [vmem:[%s3 + $0x10] sm:$0xff]
      %v372 = vld [vmem:[%s3 + $0x18] sm:$0xff]
      %v373 = vld [vmem:[%s3 + $0x20] sm:$0xff]
      %v374 = vld [vmem:[%s3 + $0x28] sm:$0xff]
      %v375 = vld [vmem:[%s3 + $0x30] sm:$0xff]
      %v376 = vld [vmem:[%s3 + $0x38] sm:$0xff]
      %v377 = vld [vmem:[%s3 + $0x40] sm:$0xff]
      %v378 = vld [vmem:[%s3 + $0x48] sm:$0xff]
      %v379 = vld [vmem:[%s3 + $0x50] sm:$0xff]
      %v380 = vld [vmem:[%s3 + $0x58] sm:$0xff]
      %v381 = vld [vmem:[%s3 + $0x60] sm:$0xff]
      %v382 = vld [vmem:[%s3 + $0x68] sm:$0xff]
      %v383 = vld [vmem:[%s3 + $0x70] sm:$0xff]
      %v384 = vld [vmem:[%s3 + $0x78] sm:$0xff]
      %v385 = vld [vmem:[%s4] sm:$0x1]
      %v387 = vlaneseq
      %v388 = vshrl.u32 %v387, 7
      %v389 = vsub.s32 0, %v388
      %v390 = vrot.slane %v385, %v389
      %392 = vmatprep.subr.mxu0 0.0
      %393 = vmatpush1.msra.mxu0 %v384
      %394 = vmatprep.subr.mxu0 0.0
      %395 = vmatpush1.msra.mxu0 %v383
      %396 = vmatprep.subr.mxu0 0.0
      %397 = vmatpush1.msra.mxu0 %v382
      %398 = vmatprep.subr.mxu0 0.0
      %399 = vmatpush1.msra.mxu0 %v381
      %400 = vmatprep.subr.mxu0 0.0
      %401 = vmatpush1.msra.mxu0 %v380
      %402 = vmatprep.subr.mxu0 0.0
      %403 = vmatpush1.msra.mxu0 %v379
      %404 = vmatprep.subr.mxu0 0.0
      %405 = vmatpush1.msra.mxu0 %v378
      %406 = vmatprep.subr.mxu0 0.0
      %407 = vmatpush1.msra.mxu0 %v377
      %408 = vmatprep.subr.mxu0 0.0
      %409 = vmatpush1.msra.mxu0 %v376
      %410 = vmatprep.subr.mxu0 0.0
      %411 = vmatpush1.msra.mxu0 %v375
      %412 = vmatprep.subr.mxu0 0.0
      %413 = vmatpush1.msra.mxu0 %v374
      %414 = vmatprep.subr.mxu0 0.0
      %415 = vmatpush1.msra.mxu0 %v373
      %416 = vmatprep.subr.mxu0 0.0
      %417 = vmatpush1.msra.mxu0 %v372
      %418 = vmatprep.subr.mxu0 0.0
      %419 = vmatpush1.msra.mxu0 %v371
      %420 = vmatprep.subr.mxu0 0.0
      %421 = vmatpush1.msra.mxu0 %v370
      %422 = vmatprep.subr.mxu0 0.0
      %423 = vmatpush1.msra.mxu0 %v369
      %424 = vmatprep.subr.mxu0 0.0
      %425 = vmatpush2.msra.mxu0 0.0
      %426 = vmatprep.subr.mxu0 0.0
      %427 = vmatpush2.msra.mxu0 0.0
      %428 = vmatprep.subr.mxu0 0.0
      %429 = vmatpush2.msra.mxu0 0.0
      %430 = vmatprep.subr.mxu0 0.0
      %431 = vmatpush2.msra.mxu0 0.0
      %432 = vmatprep.subr.mxu0 0.0
      %433 = vmatpush2.msra.mxu0 0.0
      %434 = vmatprep.subr.mxu0 0.0
      %435 = vmatpush2.msra.mxu0 0.0
      %436 = vmatprep.subr.mxu0 0.0
      %437 = vmatpush2.msra.mxu0 0.0
      %438 = vmatprep.subr.mxu0 0.0
      %439 = vmatpush2.msra.mxu0 0.0
      %440 = vmatprep.subr.mxu0 0.0
      %441 = vmatpush2.msra.mxu0 0.0
      %442 = vmatprep.subr.mxu0 0.0
      %443 = vmatpush2.msra.mxu0 0.0
      %444 = vmatprep.subr.mxu0 0.0
      %445 = vmatpush2.msra.mxu0 0.0
      %446 = vmatprep.subr.mxu0 0.0
      %447 = vmatpush2.msra.mxu0 0.0
      %448 = vmatprep.subr.mxu0 0.0
      %449 = vmatpush2.msra.mxu0 0.0
      %450 = vmatprep.subr.mxu0 0.0
      %451 = vmatpush2.msra.mxu0 0.0
      %452 = vmatprep.subr.mxu0 0.0
      %453 = vmatpush2.msra.mxu0 0.0
      %454 = vmatprep.subr.mxu0 0.0
      %455 = vmatpush2.msra.mxu0 0.0
      %456 = vmatprep.mubr.f32.mxu0 0.0
      %457 = vmatmul.mubr.f32.gmra.mxu0 %v368
      %v458 = vpop.f32.mrf.mxu0
      %v459 = vadd.f32 %v390, %v458
      %v460 = vpop.f32.mrf.mxu0
      %461 = vdwg.mxu0
      %v462 = vmax.f32 %v459, 0.0
      %v463 = vld [vmem:[%s5] sm:$0xff]
      %v464 = vld [vmem:[%s5 + $0x8] sm:$0xff]
      %v465 = vld [vmem:[%s5 + $0x10] sm:$0xff]
      %v466 = vld [vmem:[%s5 + $0x18] sm:$0xff]
      %v467 = vld [vmem:[%s5 + $0x20] sm:$0xff]
      %v468 = vld [vmem:[%s5 + $0x28] sm:$0xff]
      %v469 = vld [vmem:[%s5 + $0x30] sm:$0xff]
      %v470 = vld [vmem:[%s5 + $0x38] sm:$0xff]
      %v471 = vld [vmem:[%s5 + $0x40] sm:$0xff]
      %v472 = vld [vmem:[%s5 + $0x48] sm:$0xff]
      %v473 = vld [vmem:[%s5 + $0x50] sm:$0xff]
      %v474 = vld [vmem:[%s5 + $0x58] sm:$0xff]
      %v475 = vld [vmem:[%s5 + $0x60] sm:$0xff]
      %v476 = vld [vmem:[%s5 + $0x68] sm:$0xff]
      %v477 = vld [vmem:[%s5 + $0x70] sm:$0xff]
      %v478 = vld [vmem:[%s5 + $0x78] sm:$0xff]
      %v479 = vld [vmem:[%s6] sm:$0x1]
      %v481 = vlaneseq
      %v482 = vshrl.u32 %v481, 7
      %v483 = vsub.s32 0, %v482
      %v484 = vrot.slane %v479, %v483
      %486 = vmatprep.subr.mxu0 0.0
      %487 = vmatpush1.msra.mxu0 %v478
      %488 = vmatprep.subr.mxu0 0.0
      %489 = vmatpush1.msra.mxu0 %v477
      %490 = vmatprep.subr.mxu0 0.0
      %491 = vmatpush1.msra.mxu0 %v476
      %492 = vmatprep.subr.mxu0 0.0
      %493 = vmatpush1.msra.mxu0 %v475
      %494 = vmatprep.subr.mxu0 0.0
      %495 = vmatpush1.msra.mxu0 %v474
      %496 = vmatprep.subr.mxu0 0.0
      %497 = vmatpush1.msra.mxu0 %v473
      %498 = vmatprep.subr.mxu0 0.0
      %499 = vmatpush1.msra.mxu0 %v472
      %500 = vmatprep.subr.mxu0 0.0
      %501 = vmatpush1.msra.mxu0 %v471
      %502 = vmatprep.subr.mxu0 0.0
      %503 = vmatpush1.msra.mxu0 %v470
      %504 = vmatprep.subr.mxu0 0.0
      %505 = vmatpush1.msra.mxu0 %v469
      %506 = vmatprep.subr.mxu0 0.0
      %507 = vmatpush1.msra.mxu0 %v468
      %508 = vmatprep.subr.mxu0 0.0
      %509 = vmatpush1.msra.mxu0 %v467
      %510 = vmatprep.subr.mxu0 0.0
      %511 = vmatpush1.msra.mxu0 %v466
      %512 = vmatprep.subr.mxu0 0.0
      %513 = vmatpush1.msra.mxu0 %v465
      %514 = vmatprep.subr.mxu0 0.0
      %515 = vmatpush1.msra.mxu0 %v464
      %516 = vmatprep.subr.mxu0 0.0
      %517 = vmatpush1.msra.mxu0 %v463
      %518 = vmatprep.subr.mxu0 0.0
      %519 = vmatpush2.msra.mxu0 0.0
      %520 = vmatprep.subr.mxu0 0.0
      %521 = vmatpush2.msra.mxu0 0.0
      %522 = vmatprep.subr.mxu0 0.0
      %523 = vmatpush2.msra.mxu0 0.0
      %524 = vmatprep.subr.mxu0 0.0
      %525 = vmatpush2.msra.mxu0 0.0
      %526 = vmatprep.subr.mxu0 0.0
      %527 = vmatpush2.msra.mxu0 0.0
      %528 = vmatprep.subr.mxu0 0.0
      %529 = vmatpush2.msra.mxu0 0.0
      %530 = vmatprep.subr.mxu0 0.0
      %531 = vmatpush2.msra.mxu0 0.0
      %532 = vmatprep.subr.mxu0 0.0
      %533 = vmatpush2.msra.mxu0 0.0
      %534 = vmatprep.subr.mxu0 0.0
      %535 = vmatpush2.msra.mxu0 0.0
      %536 = vmatprep.subr.mxu0 0.0
      %537 = vmatpush2.msra.mxu0 0.0
      %538 = vmatprep.subr.mxu0 0.0
      %539 = vmatpush2.msra.mxu0 0.0
      %540 = vmatprep.subr.mxu0 0.0
      %541 = vmatpush2.msra.mxu0 0.0
      %542 = vmatprep.subr.mxu0 0.0
      %543 = vmatpush2.msra.mxu0 0.0
      %544 = vmatprep.subr.mxu0 0.0
      %545 = vmatpush2.msra.mxu0 0.0
      %546 = vmatprep.subr.mxu0 0.0
      %547 = vmatpush2.msra.mxu0 0.0
      %548 = vmatprep.subr.mxu0 0.0
      %549 = vmatpush2.msra.mxu0 0.0
      %550 = vmatprep.mubr.f32.mxu0 0.0
      %551 = vmatmul.mubr.f32.gmra.mxu0 %v462
      %v552 = vpop.f32.mrf.mxu0
      %v553 = vadd.f32 %v484, %v552
      %v554 = vpop.f32.mrf.mxu0
      %555 = vdwg.mxu0
      %556 = vst [vmem:[%s273] sm:$0xff] %v553
      %p557 = scmp.lt.s32.totalorder %s18, 1
      %s558 = scalar_select %p557, %s18, 1
      %s559 = smul.addr %s558, 8
      %s560 = scalar_lea.vmem %s7, %s559
      // Predicated region
      $region49: #{mlp_forward_pallas.1} parent=47 // pred_check
        %p561 = pneg %p188
      $region50: #{mlp_forward_pallas.1} parent=47 // pred_check_branch
        %563 = sbr.rel (%p561) target = $region52
      $region51: #{mlp_forward_pallas.1} parent=47 // pred_region
        _
      $region52: #{mlp_forward_pallas.1} parent=47 // pred_fallthru
        _
    $region48: #{mlp_forward_pallas.1} parent=5 // pred_fallthru
      _
    %p564 = scmp.le.s32.totalorder 2, %s13
    // Predicated region
    $region53: #{mlp_forward_pallas.1} parent=5 // pred_check
      %p565 = pneg %p564
    $region54: #{mlp_forward_pallas.1} parent=5 // pred_check_branch
      %567 = sbr.rel (%p565) target = $region56
    $region55: #{mlp_forward_pallas.1} parent=5 // pred_region
      %s568 = ssub.s32 %s13, 2
      // Predicated region
      $region57: #{mlp_forward_pallas.1} parent=55 // pred_check
        %p569 = pneg %p194
      $region58: #{mlp_forward_pallas.1} parent=55 // pred_check_branch
        %571 = sbr.rel (%p569) target = $region60
      $region59: #{mlp_forward_pallas.1} parent=55 // pred_region
        %p572 = scmp.lt.s32.totalorder %s19, 1
        %s573 = scalar_select %p572, %s19, 1
        %s574 = smul.addr %s573, 8
        %s575 = scalar_lea.vmem %s7, %s574
      $region60: #{mlp_forward_pallas.1} parent=55 // pred_fallthru
        _
    $region56: #{mlp_forward_pallas.1} parent=5 // pred_fallthru
      _
  $region6: #{mlp_forward_pallas.1} parent=0 // loop_footer
    %s17 = sadd.s32 1, %s13
  $region7: #{mlp_forward_pallas.1} parent=0 // loop_footer_branch
    %12 = sbr.rel target = $region3
  $region8: #{mlp_forward_pallas.1} parent=0 // loop_exit
    _

</llo_original>
